<compile_context>
chip_gen: v5e
topology: v5e:2x2
jax: 0.10.0
libtpu: 0.0.40
codegen_flags: <defaults>
</compile_context>

<pallas_src>
import functools

import jax
import jax.numpy as jnp
from jax.experimental import pallas as pl
from jax.experimental.pallas import tpu as pltpu

# Track indices from the original module.
DNASE_IDX = [33, 34, 35, 121, 122, 123, 625]
CAGE_IDX = [4828, 5111]
TRACK_IDX = DNASE_IDX + CAGE_IDX            # 9 tracks

N_TRACKS = 5313                             # Enformer 'human' head width
LANE = 128


def _round_up(x, m):
    return (x + m - 1) // m * m


# ----------------------------------------------------------------------------
# Kernel: fused trunk (Linear + GELU) + pre-sliced head (Linear + softplus).
# ----------------------------------------------------------------------------
def k562_kernel(x_ref, wt_ref, bt_ref, wh_ref, bh_ref, o_ref):
    """One (tm, Dp) row tile of the flattened [B*L, Dp] input.

    x_ref:  (tm, Dp)  bf16   input embeddings (row tile)
    wt_ref: (Dp, Dp)  bf16   trunk weight      bt_ref: (1, Dp)  f32 trunk bias
    wh_ref: (Dp, TN)  bf16   head weight, ONLY the 9 selected tracks
                             (zero-padded to TN=128 lanes)
    bh_ref: (1, TN)   f32    head bias (selected tracks, zero-padded)
    o_ref:  (tm, TN)  f32    softplus(head) for the selected tracks
    """
    # Trunk: Linear (bf16 MXU, f32 acc) + GELU in f32.
    h = jnp.dot(x_ref[...], wt_ref[...],
                preferred_element_type=jnp.float32) + bt_ref[...]
    h = jax.nn.gelu(h, approximate=True)

    # Head: only the 9 selected track columns (lane-padded to 128).
    logits = jnp.dot(h.astype(jnp.bfloat16), wh_ref[...],
                     preferred_element_type=jnp.float32) + bh_ref[...]
    o_ref[...] = jax.nn.softplus(logits)


def _vmem_budget(tm, dp, tn):
    """Explicit VMEM budget (bytes) for the pipeline, with headroom."""
    bf16, f32 = 2, 4
    dbuf = 2  # Pallas double-buffers pipelined blocks.
    pipelined = dbuf * (tm * dp * bf16          # x tile
                        + dp * dp * bf16        # trunk weight
                        + dp * f32              # trunk bias
                        + dp * tn * bf16        # head weight (pre-sliced)
                        + tn * f32              # head bias
                        + tm * tn * f32)        # output tile
    live = tm * dp * f32 * 2                    # in-kernel f32 intermediates
    budget = int(1.25 * (pipelined + live)) + (1 << 20)
    return min(max(budget, 32 << 20), 100 << 20)


@functools.partial(jax.jit, static_argnames=("tm",))
def k562_forward(x, wt_p, bt_p, wh_sel, bh_sel, *, tm=128):
    """x: [B, L, D] f32 -> [B, L, 9] f32 (the 9 selected tracks).

    wt_p/bt_p/wh_sel/bh_sel are the padded, pre-sliced params from
    prepare_params() (head already reduced to the 9 selected tracks).
    """
    B, L, D = x.shape
    M = B * L
    Dp = wt_p.shape[0]                  # embedding dim padded to lane multiple
    TN = wh_sel.shape[1]                # 9 tracks padded to 128 lanes
    n_sel = len(TRACK_IDX)

    tm = min(tm, _round_up(M, 8))
    m_pad = _round_up(M, tm)

    # Zero-pad rows to the tile size and the embedding dim to Dp; cast to bf16.
    x2 = jnp.zeros((m_pad, Dp), jnp.bfloat16)
    x2 = x2.at[:M, :D].set(x.reshape(M, D).astype(jnp.bfloat16))

    out_full = pl.pallas_call(
        k562_kernel,
        out_shape=jax.ShapeDtypeStruct((m_pad, TN), jnp.float32),
        grid=(m_pad // tm,),
        in_specs=[
            pl.BlockSpec((tm, Dp), lambda i: (i, 0)),    # x row tile
            pl.BlockSpec((Dp, Dp), lambda i: (0, 0)),    # trunk W  (invariant)
            pl.BlockSpec((1, Dp), lambda i: (0, 0)),     # trunk b  (invariant)
            pl.BlockSpec((Dp, TN), lambda i: (0, 0)),    # head W   (pre-sliced)
            pl.BlockSpec((1, TN), lambda i: (0, 0)),     # head b   (pre-sliced)
        ],
        out_specs=pl.BlockSpec((tm, TN), lambda i: (i, 0)),
        compiler_params=pltpu.CompilerParams(
            # Row tiles are fully independent (no carried scratch), so this
            # axis can shard across TensorCores on v7x.
            dimension_semantics=("parallel",),
            vmem_limit_bytes=_vmem_budget(tm, Dp, TN),
        ),
    )(x2, wt_p, bt_p, wh_sel, bh_sel)

    # Drop row/lane padding; no gather needed — columns 0..8 ARE the 9 tracks.
    return out_full[:M, :n_sel].reshape(B, L, n_sel)


# ----------------------------------------------------------------------------
# Synthetic "Enformer" parameters + host-side prep (slice + pad + bf16 cast).
# ----------------------------------------------------------------------------
def init_params(key, d, n_tracks=N_TRACKS):
    """Deterministic synthetic 'model' parameters (full 5313-track head)."""
    k1, k2, k3, k4 = jax.random.split(key, 4)
    wt = 0.1 * jax.random.normal(k1, (d, d), jnp.float32)
    bt = 0.1 * jax.random.normal(k2, (d,), jnp.float32)
    wh = 0.1 * jax.random.normal(k3, (d, n_tracks), jnp.float32)
    bh = 0.1 * jax.random.normal(k4, (n_tracks,), jnp.float32)
    return wt, bt, wh, bh


def prepare_params(wt, bt, wh, bh):
    """One-time prep: fold the wrapper's 9-track selection into the head
    weights, pad dims to lane multiples, cast matmul operands to bf16."""
    d = wt.shape[0]
    dp = _round_up(d, LANE)
    n_sel = len(TRACK_IDX)
    tn = _round_up(n_sel, LANE)
    idx = jnp.asarray(TRACK_IDX, jnp.int32)

    wt_p = jnp.zeros((dp, dp), jnp.bfloat16).at[:d, :d].set(
        wt.astype(jnp.bfloat16))
    bt_p = jnp.zeros((1, dp), jnp.float32).at[0, :d].set(bt)
    wh_sel = jnp.zeros((dp, tn), jnp.bfloat16).at[:d, :n_sel].set(
        wh[:, idx].astype(jnp.bfloat16))
    bh_sel = jnp.zeros((1, tn), jnp.float32).at[0, :n_sel].set(bh[idx])
    return wt_p, bt_p, wh_sel, bh_sel


def reference_forward(x, wt, bt, wh, bh):
    """Pure-JAX f32 reference of the synthetic model + wrapper slice."""
    h = jax.nn.gelu(jnp.einsum("bld,de->ble", x, wt) + bt, approximate=True)
    y = jax.nn.softplus(jnp.einsum("bld,dt->blt", h, wh) + bh)
    return y[:, :, jnp.asarray(TRACK_IDX)]


if __name__ == "__main__":
    key = jax.random.PRNGKey(0)
    kx, kp = jax.random.split(key)

    B, L, D = 2, 8, 32                   # small shapes: batch=2, seq bins=8, hidden=32
    x = jax.random.normal(kx, (B, L, D), jnp.float32)

    wt, bt, wh, bh = init_params(kp, D)
    wt_p, bt_p, wh_sel, bh_sel = prepare_params(wt, bt, wh, bh)

    out = k562_forward(x, wt_p, bt_p, wh_sel, bh_sel)
    out = jax.block_until_ready(out)

    assert out.shape == (B, L, len(TRACK_IDX)), out.shape

    ref = reference_forward(x, wt, bt, wh, bh)
    # bf16 matmul inputs (f32 accumulation) vs f32 reference -> loose tolerance.
    assert jnp.allclose(out, ref, rtol=2e-2, atol=2e-2), (
        float(jnp.max(jnp.abs(out - ref))))

    print("KERNEL_OK")
</pallas_src>

<mosaic_0001>
module attributes {stable_mosaic.version = 11 : i64} {
  func.func @k562_kernel(%arg0: i32, %arg1: memref<16x128xbf16, #tpu.memory_space<vmem>>, %arg2: memref<128x128xbf16, #tpu.memory_space<vmem>>, %arg3: memref<1x128xf32, #tpu.memory_space<vmem>>, %arg4: memref<128x128xbf16, #tpu.memory_space<vmem>>, %arg5: memref<1x128xf32, #tpu.memory_space<vmem>>, %arg6: memref<16x128xf32, #tpu.memory_space<vmem>>) attributes {dimension_semantics = [#tpu.dimension_semantics<parallel>], iteration_bounds = array<i64: 1>, scalar_prefetch = 0 : i64, scratch_operands = 0 : i64, tpu.core_type = #tpu.core_type<tc>, window_params = [{transform_indices = @transform_0, window_bounds = array<i64: 16, 128>}, {pipeline_mode = #tpu.pipeline_mode<synchronous>, transform_indices = @transform_1, window_bounds = array<i64: 128, 128>}, {pipeline_mode = #tpu.pipeline_mode<synchronous>, transform_indices = @transform_2, window_bounds = array<i64: 1, 128>}, {pipeline_mode = #tpu.pipeline_mode<synchronous>, transform_indices = @transform_3, window_bounds = array<i64: 128, 128>}, {pipeline_mode = #tpu.pipeline_mode<synchronous>, transform_indices = @transform_4, window_bounds = array<i64: 1, 128>}, {transform_indices = @transform_5, window_bounds = array<i64: 16, 128>}]} {
    %c0 = arith.constant 0 : index
    %c0_0 = arith.constant 0 : index
    %0 = vector.load %arg1[%c0, %c0_0] : memref<16x128xbf16, #tpu.memory_space<vmem>>, vector<16x128xbf16>
    %c0_1 = arith.constant 0 : index
    %c0_2 = arith.constant 0 : index
    %1 = vector.load %arg2[%c0_1, %c0_2] : memref<128x128xbf16, #tpu.memory_space<vmem>>, vector<128x128xbf16>
    %cst = arith.constant dense<0.000000e+00> : vector<16x128xf32>
    %2 = tpu.matmul %0, %1, %cst {dimension_numbers = #tpu.dot_dimension_numbers<[1], [0], [0], [1], [0, 0, 1, 1], [], []>} : vector<16x128xbf16>, vector<128x128xbf16>, vector<16x128xf32> -> vector<16x128xf32>
    %c0_3 = arith.constant 0 : index
    %c0_4 = arith.constant 0 : index
    %3 = vector.load %arg3[%c0_3, %c0_4] : memref<1x128xf32, #tpu.memory_space<vmem>>, vector<1x128xf32>
    %4 = vector.broadcast %3 : vector<1x128xf32> to vector<16x128xf32>
    %5 = arith.addf %2, %4 : vector<16x128xf32>
    %6 = arith.mulf %5, %5 : vector<16x128xf32>
    %7 = arith.mulf %5, %6 : vector<16x128xf32>
    %cst_5 = arith.constant 4.471500e-02 : f32
    %8 = vector.broadcast %cst_5 : f32 to vector<16x128xf32>
    %9 = arith.mulf %8, %7 : vector<16x128xf32>
    %10 = arith.addf %5, %9 : vector<16x128xf32>
    %cst_6 = arith.constant 0.797884583 : f32
    %11 = vector.broadcast %cst_6 : f32 to vector<16x128xf32>
    %12 = arith.mulf %11, %10 : vector<16x128xf32>
    %13 = math.tanh %12 : vector<16x128xf32>
    %cst_7 = arith.constant 1.000000e+00 : f32
    %14 = vector.broadcast %cst_7 : f32 to vector<16x128xf32>
    %15 = arith.addf %14, %13 : vector<16x128xf32>
    %cst_8 = arith.constant 5.000000e-01 : f32
    %16 = vector.broadcast %cst_8 : f32 to vector<16x128xf32>
    %17 = arith.mulf %16, %15 : vector<16x128xf32>
    %18 = arith.mulf %5, %17 : vector<16x128xf32>
    %19 = arith.truncf %18 : vector<16x128xf32> to vector<16x128xbf16>
    %c0_9 = arith.constant 0 : index
    %c0_10 = arith.constant 0 : index
    %20 = vector.load %arg4[%c0_9, %c0_10] : memref<128x128xbf16, #tpu.memory_space<vmem>>, vector<128x128xbf16>
    %cst_11 = arith.constant dense<0.000000e+00> : vector<16x128xf32>
    %21 = tpu.matmul %19, %20, %cst_11 {dimension_numbers = #tpu.dot_dimension_numbers<[1], [0], [0], [1], [0, 0, 1, 1], [], []>} : vector<16x128xbf16>, vector<128x128xbf16>, vector<16x128xf32> -> vector<16x128xf32>
    %c0_12 = arith.constant 0 : index
    %c0_13 = arith.constant 0 : index
    %22 = vector.load %arg5[%c0_12, %c0_13] : memref<1x128xf32, #tpu.memory_space<vmem>>, vector<1x128xf32>
    %23 = vector.broadcast %22 : vector<1x128xf32> to vector<16x128xf32>
    %24 = arith.addf %21, %23 : vector<16x128xf32>
    %cst_14 = arith.constant 0.000000e+00 : f32
    %25 = vector.broadcast %cst_14 : f32 to vector<16x128xf32>
    %26 = arith.maximumf %24, %25 : vector<16x128xf32>
    %27 = vector.broadcast %cst_14 : f32 to vector<16x128xf32>
    %28 = arith.subf %24, %27 : vector<16x128xf32>
    %29 = arith.cmpf one, %28, %28 : vector<16x128xf32>
    %30 = vector.broadcast %cst_14 : f32 to vector<16x128xf32>
    %31 = arith.addf %24, %30 : vector<16x128xf32>
    %32 = math.absf %28 : vector<16x128xf32>
    %cst_15 = arith.constant 0.000000e+00 : f32
    %33 = vector.broadcast %cst_15 : f32 to vector<16x128xf32>
    %34 = arith.subf %33, %32 : vector<16x128xf32>
    %35 = math.exp %34 : vector<16x128xf32>
    %36 = math.log1p %35 : vector<16x128xf32>
    %37 = arith.addf %26, %36 : vector<16x128xf32>
    %38 = arith.select %29, %31, %37 : vector<16x128xi1>, vector<16x128xf32>
    %c0_16 = arith.constant 0 : index
    %c0_17 = arith.constant 0 : index
    %39 = vector.load %arg6[%c0_16, %c0_17] : memref<16x128xf32, #tpu.memory_space<vmem>>, vector<16x128xf32>
    tpu.vector_store %arg6[%c0_16, %c0_17], %38 {strides = array<i32>} : memref<16x128xf32, #tpu.memory_space<vmem>>, vector<16x128xf32>,
    return
  }
  func.func @transform_0(%arg0: i32) -> (i32, i32) {
    %c0_i32 = arith.constant 0 : i32
    %c0_i32_0 = arith.constant 0 : i32
    return %arg0, %c0_i32 : i32, i32
  }
  func.func @transform_1(%arg0: i32) -> (i32, i32) {
    %c0_i32 = arith.constant 0 : i32
    %c0_i32_0 = arith.constant 0 : i32
    %c0_i32_1 = arith.constant 0 : i32
    return %c0_i32, %c0_i32_0 : i32, i32
  }
  func.func @transform_2(%arg0: i32) -> (i32, i32) {
    %c0_i32 = arith.constant 0 : i32
    %c0_i32_0 = arith.constant 0 : i32
    %c0_i32_1 = arith.constant 0 : i32
    return %c0_i32, %c0_i32_0 : i32, i32
  }
  func.func @transform_3(%arg0: i32) -> (i32, i32) {
    %c0_i32 = arith.constant 0 : i32
    %c0_i32_0 = arith.constant 0 : i32
    %c0_i32_1 = arith.constant 0 : i32
    return %c0_i32, %c0_i32_0 : i32, i32
  }
  func.func @transform_4(%arg0: i32) -> (i32, i32) {
    %c0_i32 = arith.constant 0 : i32
    %c0_i32_0 = arith.constant 0 : i32
    %c0_i32_1 = arith.constant 0 : i32
    return %c0_i32, %c0_i32_0 : i32, i32
  }
  func.func @transform_5(%arg0: i32) -> (i32, i32) {
    %c0_i32 = arith.constant 0 : i32
    %c0_i32_0 = arith.constant 0 : i32
    return %arg0, %c0_i32 : i32, i32
  }
}

</mosaic_0001>

<llo_original>
// kernel: k562_forward.1
$region0: #{k562_forward.1}
  #allocation0 [shape = 'u32[]', space=smem, size = 0x4, offset = 0x4, fixed_abs, tag = 'smem constant byte address 0x4 - core index']
  #allocation1 [shape = 'u32[72,128]{1,0:T(1,128)}', space=vmem, size = 0x9000, scoped, tag = 'internal scratch']
  %s0 = inlined_call_operand.vmem [shape: bf16[16,128], index: 0, kind: input, shape index: {}]
  %s1 = inlined_call_operand.hbm [shape: bf16[128,128], index: 1, kind: input, shape index: {}]
  %s2 = inlined_call_operand.vmem [shape: f32[1,128], index: 2, kind: input, shape index: {}]
  %s3 = inlined_call_operand.hbm [shape: bf16[128,128], index: 3, kind: input, shape index: {}]
  %s4 = inlined_call_operand.vmem [shape: f32[1,128], index: 4, kind: input, shape index: {}]
  %s5 = inlined_call_operand.vmem [shape: f32[16,128], index: 5, kind: output, shape index: {}]
  %s6 = sld [smem:[#allocation0]]
  $region38: #{k562_forward.1} parent=0
    _
  %s8 = ssub.s32 1, %s6
  %s9 = scalar_select 0, %s8, %s6
  $region1: #{k562_forward.1} parent=0
    #allocation2 [shape = 'u8[32768]{0}', space=vmem, size = 0x8000, scoped, tag = 'input window, operand 1, single buffered']
    #allocation3 [shape = 's32[1]{0}', space=sflag, size = 0x4, scoped, tag = 'scoped memory for k562_forward.1']
    #allocation4 [shape = 'u8[32768]{0}', space=vmem, size = 0x8000, scoped, tag = 'input window, operand 3, single buffered']
    #allocation5 [shape = 's32[1]{0}', space=sflag, size = 0x4, scoped, tag = 'scoped memory for k562_forward.1']
    %10 = vsyncpa [#allocation3], 0
    %11 = vsyncpa [#allocation5], 0
    // Predicated region
    $region2: #{k562_forward.1} parent=1 // pred_check
      _
    $region3: #{k562_forward.1} parent=1 // pred_check_branch
      %13 = sbr.rel (0) target = $region5
    $region4: #{k562_forward.1} parent=1 // pred_region
      _
    $region5: #{k562_forward.1} parent=1 // pred_fallthru
      _
    // Predicated region
    $region6: #{k562_forward.1} parent=1 // pred_check
      _
    $region7: #{k562_forward.1} parent=1 // pred_check_branch
      %15 = sbr.rel (0) target = $region9
    $region8: #{k562_forward.1} parent=1 // pred_region
      %17 = vsyncadd [#allocation3], 0
      %s18 = sshll.u32 %s1, 4
      %s19 = int_to_ptr.hbm [resolvable:$true] %s18
      %s20 = sshll.u32 [#allocation2], 4
      %s21 = int_to_ptr.vmem [resolvable:$true] %s20
      %26 = dma.hbm_to_vmem [thread:$0]  %s19, 1024, %s21, [#allocation3], 64, 64, 4
    $region9: #{k562_forward.1} parent=1 // pred_fallthru
      _
    // Predicated region
    $region10: #{k562_forward.1} parent=1 // pred_check
      _
    $region11: #{k562_forward.1} parent=1 // pred_check_branch
      %28 = sbr.rel (0) target = $region13
    $region12: #{k562_forward.1} parent=1 // pred_region
      _
    $region13: #{k562_forward.1} parent=1 // pred_fallthru
      _
    // Predicated region
    $region14: #{k562_forward.1} parent=1 // pred_check
      _
    $region15: #{k562_forward.1} parent=1 // pred_check_branch
      %30 = sbr.rel (0) target = $region17
    $region16: #{k562_forward.1} parent=1 // pred_region
      %32 = vsyncadd [#allocation5], 0
      %s33 = sshll.u32 %s3, 4
      %s34 = int_to_ptr.hbm [resolvable:$true] %s33
      %s35 = sshll.u32 [#allocation4], 4
      %s36 = int_to_ptr.vmem [resolvable:$true] %s35
      %41 = dma.hbm_to_vmem [thread:$0]  %s34, 1024, %s36, [#allocation5], 64, 64, 4
    $region17: #{k562_forward.1} parent=1 // pred_fallthru
      _
    // Predicated region
    $region18: #{k562_forward.1} parent=1 // pred_check
      _
    $region19: #{k562_forward.1} parent=1 // pred_check_branch
      %43 = sbr.rel (0) target = $region21
    $region20: #{k562_forward.1} parent=1 // pred_region
      _
    $region21: #{k562_forward.1} parent=1 // pred_fallthru
      _
    // Predicated region
    $region22: #{k562_forward.1} parent=1 // pred_check
      _
    $region23: #{k562_forward.1} parent=1 // pred_check_branch
      %45 = sbr.rel (0) target = $region25
    $region24: #{k562_forward.1} parent=1 // pred_region
      %47 = dma.done [#allocation3], 1024
    $region25: #{k562_forward.1} parent=1 // pred_fallthru
      _
    // Predicated region
    $region26: #{k562_forward.1} parent=1 // pred_check
      _
    $region27: #{k562_forward.1} parent=1 // pred_check_branch
      %49 = sbr.rel (0) target = $region29
    $region28: #{k562_forward.1} parent=1 // pred_region
      %51 = dma.done [#allocation5], 1024
    $region29: #{k562_forward.1} parent=1 // pred_fallthru
      _
    %v52 = vld [vmem:[%s0] sm:$0xf]
    %v53 = vld [vmem:[%s0 + $0x4] sm:$0xf]
    %v54 = vld [vmem:[#allocation2] sm:$0xf]
    %v55 = vld [vmem:[#allocation2 + $0x4] sm:$0xf]
    %v56 = vld [vmem:[#allocation2 + $0x8] sm:$0xf]
    %v57 = vld [vmem:[#allocation2 + $0xc] sm:$0xf]
    %v58 = vld [vmem:[#allocation2 + $0x10] sm:$0xf]
    %v59 = vld [vmem:[#allocation2 + $0x14] sm:$0xf]
    %v60 = vld [vmem:[#allocation2 + $0x18] sm:$0xf]
    %v61 = vld [vmem:[#allocation2 + $0x1c] sm:$0xf]
    %v62 = vld [vmem:[#allocation2 + $0x20] sm:$0xf]
    %v63 = vld [vmem:[#allocation2 + $0x24] sm:$0xf]
    %v64 = vld [vmem:[#allocation2 + $0x28] sm:$0xf]
    %v65 = vld [vmem:[#allocation2 + $0x2c] sm:$0xf]
    %v66 = vld [vmem:[#allocation2 + $0x30] sm:$0xf]
    %v67 = vld [vmem:[#allocation2 + $0x34] sm:$0xf]
    %v68 = vld [vmem:[#allocation2 + $0x38] sm:$0xf]
    %v69 = vld [vmem:[#allocation2 + $0x3c] sm:$0xf]
    %v70 = vld [vmem:[%s2] sm:$0x1]
    %v72 = vperm.slane %v70, 0
    %v76 = vunpack.c.l.b16 %v52
    %v77 = vunpack.c.l.b16 %v53
    %v78 = vpack.c.b16 %v77, %v76
    %v96 = vunpack.c.l.b16 %v54
    %v97 = vunpack.c.l.b16 %v55
    %v98 = vunpack.c.l.b16 %v56
    %v99 = vunpack.c.l.b16 %v57
    %v100 = vunpack.c.l.b16 %v58
    %v101 = vunpack.c.l.b16 %v59
    %v102 = vunpack.c.l.b16 %v60
    %v103 = vunpack.c.l.b16 %v61
    %v104 = vunpack.c.l.b16 %v62
    %v105 = vunpack.c.l.b16 %v63
    %v106 = vunpack.c.l.b16 %v64
    %v107 = vunpack.c.l.b16 %v65
    %v108 = vunpack.c.l.b16 %v66
    %v109 = vunpack.c.l.b16 %v67
    %v110 = vunpack.c.l.b16 %v68
    %v111 = vunpack.c.l.b16 %v69
    %v112 = vpack.c.b16 %v97, %v96
    %v113 = vpack.c.b16 %v99, %v98
    %v114 = vpack.c.b16 %v101, %v100
    %v115 = vpack.c.b16 %v103, %v102
    %v116 = vpack.c.b16 %v105, %v104
    %v117 = vpack.c.b16 %v107, %v106
    %v118 = vpack.c.b16 %v109, %v108
    %v119 = vpack.c.b16 %v111, %v110
    %128 = vmatpush.bf16.msra.mxu0 %v119
    %129 = vmatpush.bf16.msra.mxu0 %v118
    %130 = vmatpush.bf16.msra.mxu0 %v117
    %131 = vmatpush.bf16.msra.mxu0 %v116
    %132 = vmatpush.bf16.msra.mxu0 %v115
    %133 = vmatpush.bf16.msra.mxu0 %v114
    %134 = vmatpush.bf16.msra.mxu0 %v113
    %135 = vmatpush.bf16.msra.mxu0 %v112
    %136 = vmatmul.bf16.gmra.mxu0 %v78
    %v137 = vpop.f32.mrf.mxu0
    %v138 = vadd.f32 %v72, %v137
    %v139 = vpop.f32.mrf.mxu0
    %v140 = vadd.f32 %v72, %v139
    %141 = vdwg.mxu0
    %v142 = vmul.f32 %v138, %v138
    %v143 = vmul.f32 %v140, %v140
    %v144 = vmul.f32 %v138, %v142
    %v145 = vmul.f32 %v140, %v143
    %v146 = vmul.f32 %v144, 0.044715
    %v147 = vmul.f32 %v145, 0.044715
    %v148 = vadd.f32 %v138, %v146
    %v149 = vadd.f32 %v140, %v147
    %v150 = vmul.f32 %v148, 0.7978846
    %v151 = vmul.f32 %v149, 0.7978846
    %v152 = vtanh.pop %v150
    %v153 = vtanh.pop %v151
    %v154 = vadd.f32 %v152, 1.0
    %v155 = vadd.f32 %v153, 1.0
    %v156 = vmul.f32 %v154, 0.5
    %v157 = vmul.f32 %v155, 0.5
    %v158 = vmul.f32 %v138, %v156
    %v159 = vmul.f32 %v140, %v157
    %v160 = vpack.c.bf16 %v159, %v158
    %v161 = vld [vmem:[#allocation4] sm:$0xf]
    %v162 = vld [vmem:[#allocation4 + $0x4] sm:$0xf]
    %v163 = vld [vmem:[#allocation4 + $0x8] sm:$0xf]
    %v164 = vld [vmem:[#allocation4 + $0xc] sm:$0xf]
    %v165 = vld [vmem:[#allocation4 + $0x10] sm:$0xf]
    %v166 = vld [vmem:[#allocation4 + $0x14] sm:$0xf]
    %v167 = vld [vmem:[#allocation4 + $0x18] sm:$0xf]
    %v168 = vld [vmem:[#allocation4 + $0x1c] sm:$0xf]
    %v169 = vld [vmem:[#allocation4 + $0x20] sm:$0xf]
    %v170 = vld [vmem:[#allocation4 + $0x24] sm:$0xf]
    %v171 = vld [vmem:[#allocation4 + $0x28] sm:$0xf]
    %v172 = vld [vmem:[#allocation4 + $0x2c] sm:$0xf]
    %v173 = vld [vmem:[#allocation4 + $0x30] sm:$0xf]
    %v174 = vld [vmem:[#allocation4 + $0x34] sm:$0xf]
    %v175 = vld [vmem:[#allocation4 + $0x38] sm:$0xf]
    %v176 = vld [vmem:[#allocation4 + $0x3c] sm:$0xf]
    %v177 = vld [vmem:[%s4] sm:$0x1]
    %v179 = vperm.slane %v177, 0
    %v197 = vunpack.c.l.b16 %v161
    %v198 = vunpack.c.l.b16 %v162
    %v199 = vunpack.c.l.b16 %v163
    %v200 = vunpack.c.l.b16 %v164
    %v201 = vunpack.c.l.b16 %v165
    %v202 = vunpack.c.l.b16 %v166
    %v203 = vunpack.c.l.b16 %v167
    %v204 = vunpack.c.l.b16 %v168
    %v205 = vunpack.c.l.b16 %v169
    %v206 = vunpack.c.l.b16 %v170
    %v207 = vunpack.c.l.b16 %v171
    %v208 = vunpack.c.l.b16 %v172
    %v209 = vunpack.c.l.b16 %v173
    %v210 = vunpack.c.l.b16 %v174
    %v211 = vunpack.c.l.b16 %v175
    %v212 = vunpack.c.l.b16 %v176
    %v213 = vpack.c.b16 %v198, %v197
    %v214 = vpack.c.b16 %v200, %v199
    %v215 = vpack.c.b16 %v202, %v201
    %v216 = vpack.c.b16 %v204, %v203
    %v217 = vpack.c.b16 %v206, %v205
    %v218 = vpack.c.b16 %v208, %v207
    %v219 = vpack.c.b16 %v210, %v209
    %v220 = vpack.c.b16 %v212, %v211
    %229 = vmatpush.bf16.msra.mxu0 %v220
    %230 = vmatpush.bf16.msra.mxu0 %v219
    %231 = vmatpush.bf16.msra.mxu0 %v218
    %232 = vmatpush.bf16.msra.mxu0 %v217
    %233 = vmatpush.bf16.msra.mxu0 %v216
    %234 = vmatpush.bf16.msra.mxu0 %v215
    %235 = vmatpush.bf16.msra.mxu0 %v214
    %236 = vmatpush.bf16.msra.mxu0 %v213
    %237 = vmatmul.bf16.gmra.mxu0 %v160
    %v238 = vpop.f32.mrf.mxu0
    %v239 = vadd.f32 %v179, %v238
    %v240 = vpop.f32.mrf.mxu0
    %v241 = vadd.f32 %v179, %v240
    %242 = vdwg.mxu0
    %v243 = vmax.f32 %v239, 0.0
    %v244 = vmax.f32 %v241, 0.0
    %vm245 = vcmp.ne.f32.partialorder %v239, %v239
    %vm246 = vcmp.ne.f32.partialorder %v241, %v241
    %v247 = vadd.f32 %v239, 0.0
    %v248 = vadd.f32 %v241, 0.0
    %v249 = vand.u32 2147483647, %v239
    %v250 = vand.u32 2147483647, %v241
    %v251 = vsub.f32 0.0, %v249
    %v252 = vsub.f32 0.0, %v250
    %v253 = vmul.f32 %v251, 1.442695
    %v254 = vpow.pop %v253
    %v255 = vmul.f32 %v252, 1.442695
    %v256 = vpow.pop %v255
    %v257 = vadd.f32 %v254, 1.0
    %v258 = vlog2.pop %v257
    %v259 = vmul.f32 %v258, 0.6931472
    %v260 = vmul.f32 -0.5, %v254
    %v261 = vadd.f32 %v260, 1.0
    %v262 = vmul.f32 %v261, %v254
    %v263 = vand.u32 2147483647, %v254
    %vm264 = vcmp.lt.f32.partialorder %v263, 0.0004427343
    %v265 = vsel %vm264, %v262, %v259
    %v266 = vadd.f32 %v256, 1.0
    %v267 = vlog2.pop %v266
    %v268 = vmul.f32 %v267, 0.6931472
    %v269 = vmul.f32 -0.5, %v256
    %v270 = vadd.f32 %v269, 1.0
    %v271 = vmul.f32 %v270, %v256
    %v272 = vand.u32 2147483647, %v256
    %vm273 = vcmp.lt.f32.partialorder %v272, 0.0004427343
    %v274 = vsel %vm273, %v271, %v268
    %v275 = vadd.f32 %v243, %v265
    %v276 = vadd.f32 %v244, %v274
    %v277 = vsel %vm245, %v247, %v275
    %v278 = vsel %vm246, %v248, %v276
    %279 = vst [vmem:[%s5] sm:$0xff] %v277
    %280 = vst [vmem:[%s5 + $0x8] sm:$0xff] %v278
    // Predicated region
    $region30: #{k562_forward.1} parent=1 // pred_check
      _
    $region31: #{k562_forward.1} parent=1 // pred_check_branch
      %282 = sbr.rel (0) target = $region33
    $region32: #{k562_forward.1} parent=1 // pred_region
      _
    $region33: #{k562_forward.1} parent=1 // pred_fallthru
      _
    // Predicated region
    $region34: #{k562_forward.1} parent=1 // pred_check
      _
    $region35: #{k562_forward.1} parent=1 // pred_check_branch
      %284 = sbr.rel (0) target = $region37
    $region36: #{k562_forward.1} parent=1 // pred_region
      _
    $region37: #{k562_forward.1} parent=1 // pred_fallthru
      _
    %285 = vsyncpa [#allocation3], 1
    %286 = vsyncpa [#allocation5], 1

</llo_original>
